<compile_context>
chip_gen: v5e
topology: v5e:2x2
jax: 0.10.0
libtpu: 0.0.40
codegen_flags: <defaults>
</compile_context>

<pallas_src>
import jax
import jax.numpy as jnp
from jax.experimental import pallas as pl
from jax.experimental.pallas import tpu as pltpu

BN_EPS = 1e-5
LANE = 128
SUBLANE = 8
TM_CAP = 2048          # no artificial 512 cap; tiles grow with the VMEM budget


def _round_up(x, m):
    return ((x + m - 1) // m) * m


def _vmem_budget():
    """Per-generation VMEM budget / limit (v5e,v6e: 128 MiB; v7x: 64 MiB)."""
    try:
        info = pltpu.get_tpu_info()
        cap = int(getattr(info, "vmem_capacity_bytes", 0)) or (64 << 20)
    except Exception:      # no TPU info available -> conservative (v7x per-TC)
        cap = 64 << 20
    limit = max(min(cap * 3 // 4, cap - (8 << 20)), 16 << 20)
    budget = limit * 4 // 5
    return budget, limit


# -----------------------------------------------------------------------------
# Parameter preparation: do this ONCE at init, not per forward call.
# -----------------------------------------------------------------------------
def prepare_conditioner_params(running_mean, running_var, w0, b0, w1, b1,
                               weight_dtype=jnp.bfloat16):
    """Fold eval-mode BatchNorm into Dense_0 and lane-pad to multiples of 128.

    w0 : (in_dim, embed)  Dense_0 weight (pre-transposed to x @ w0 layout)
    w1 : (embed, embed)   Dense_1 weight (x @ w1 layout)
    Returns a params dict (weights in bf16 for the MXU, biases in f32) that is
    reused by every `conditioner_apply` call.
    """
    in_dim, embed_dim = w0.shape

    rm = running_mean.reshape(-1).astype(jnp.float32)
    rv = running_var.reshape(-1).astype(jnp.float32)
    inv_std = jax.lax.rsqrt(rv + BN_EPS)
    w0_f32 = w0.astype(jnp.float32)
    # x_norm @ w0 + b0 == x @ (w0 * inv_std) + (b0 - (rm * inv_std) @ w0)
    w0f = w0_f32 * inv_std[:, None]
    b0f = b0.reshape(-1).astype(jnp.float32) - (rm * inv_std) @ w0_f32
    w1f = w1.astype(jnp.float32)
    b1f = b1.reshape(-1).astype(jnp.float32)

    embed_pad = _round_up(embed_dim, LANE)
    if embed_pad == embed_dim:
        # Fast path: already lane-dense, no padded copies materialized.
        w0p, b0p = w0f, b0f.reshape(1, embed_dim)
        w1p, b1p = w1f, b1f.reshape(1, embed_dim)
    else:
        w0p = jnp.zeros((in_dim, embed_pad), jnp.float32).at[:, :embed_dim].set(w0f)
        b0p = jnp.zeros((1, embed_pad), jnp.float32).at[:, :embed_dim].set(b0f)
        w1p = jnp.zeros((embed_pad, embed_pad), jnp.float32).at[
            :embed_dim, :embed_dim].set(w1f)
        b1p = jnp.zeros((1, embed_pad), jnp.float32).at[:, :embed_dim].set(b1f)

    # NOTE: for very large in_dim not a multiple of 128 one could also pad the
    # K dimension here (and pad x per call); for the typical small condition
    # dim this is not worth the extra x copy.
    return {
        "w0": w0p.astype(weight_dtype),
        "b0": b0p,                           # f32
        "w1": w1p.astype(weight_dtype),
        "b1": b1p,                           # f32
        "in_dim": in_dim,
        "embed_dim": embed_dim,
    }


# -----------------------------------------------------------------------------
# Kernels
# -----------------------------------------------------------------------------
def _cond_kernel_resident(x_ref, w0_ref, b0_ref, w1_ref, b1_ref, o_ref):
    """(TM, in_dim) -> (TM, embed_pad); all weights resident in VMEM."""
    h = jnp.dot(x_ref[...], w0_ref[...],
                preferred_element_type=jnp.float32) + b0_ref[...]
    h = h * jax.nn.sigmoid(h)                                   # SiLU in f32
    out = jnp.dot(h.astype(w1_ref.dtype), w1_ref[...],
                  preferred_element_type=jnp.float32) + b1_ref[...]
    o_ref[...] = out.astype(o_ref.dtype)


def _cond_kernel_ntiled(x_ref, w0_ref, b0_ref, w1_ref, b1_ref, o_ref, h_ref):
    """N-tiled Dense_1: a (embed_pad, tn) column block of w1 is streamed per
    grid step j; the hidden activation is computed once per batch tile (j==0)
    into a VMEM scratch and reused for all j."""
    @pl.when(pl.program_id(1) == 0)
    def _():
        h = jnp.dot(x_ref[...], w0_ref[...],
                    preferred_element_type=jnp.float32) + b0_ref[...]
        h = h * jax.nn.sigmoid(h)
        h_ref[...] = h.astype(h_ref.dtype)

    out = jnp.dot(h_ref[...], w1_ref[...],
                  preferred_element_type=jnp.float32) + b1_ref[...]
    o_ref[...] = out.astype(o_ref.dtype)


# -----------------------------------------------------------------------------
# Forward
# -----------------------------------------------------------------------------
def conditioner_apply(params, x, *, out_dtype=None, force_ntiled=False, tn=None):
    """Eval-mode Conditioner forward: BN -> Dense_0 -> SiLU -> Dense_1."""
    batch, in_dim = x.shape
    assert in_dim == params["in_dim"]
    embed_dim = params["embed_dim"]
    w0p, b0p, w1p, b1p = params["w0"], params["b0"], params["w1"], params["b1"]
    embed_pad = w0p.shape[1]
    out_dtype = out_dtype if out_dtype is not None else x.dtype

    wb = jnp.dtype(w0p.dtype).itemsize            # weight bytes (bf16 -> 2)
    ob = jnp.dtype(out_dtype).itemsize
    xb = wb                                       # x is fed in weight dtype

    budget, vmem_limit = _vmem_budget()
    batch_r = _round_up(batch, SUBLANE)

    def finalize_tm(raw_tm):
        t = max(SUBLANE, (int(raw_tm) // SUBLANE) * SUBLANE)
        t = min(t, TM_CAP, batch_r)
        # v7x megacore: keep >= 2 parallel batch steps when the batch allows it
        if batch_r >= 2 * SUBLANE:
            t = min(t, _round_up((batch_r + 1) // 2, SUBLANE))
        return max(t, SUBLANE)

    # Resident-weight footprint (double-buffered bf16 weights + f32 biases).
    resident_w_bytes = (2 * (in_dim * embed_pad + embed_pad * embed_pad) * wb
                        + 4 * embed_pad * 4)
    use_resident = (not force_ntiled) and (resident_w_bytes <= budget // 2)

    if use_resident:
        per_row = 2 * in_dim * xb + 2 * embed_pad * ob + embed_pad * (4 + wb)
        tm = finalize_tm((budget - resident_w_bytes) // per_row)
    else:
        # Pick tn: largest multiple of 128 <= request that divides embed_pad.
        tn_req = tn if tn is not None else min(embed_pad, 512)
        tn = max(LANE, (int(tn_req) // LANE) * LANE)
        while embed_pad % tn != 0:
            tn -= LANE
        per_row = 2 * in_dim * xb + 2 * tn * ob + embed_pad * wb   # + h scratch
        fixed = (2 * in_dim * embed_pad * wb + 2 * embed_pad * tn * wb
                 + 4 * embed_pad * 4)
        tm = finalize_tm(max((budget - fixed) // per_row, SUBLANE))

    batch_pad = _round_up(batch, tm)
    xp = x.astype(w0p.dtype)                      # bf16 feed for the MXU
    if batch_pad != batch:
        xp = jnp.pad(xp, ((0, batch_pad - batch), (0, 0)))

    flops = 2 * batch_pad * (in_dim + embed_pad) * embed_pad
    bytes_accessed = (batch_pad * in_dim * xb
                      + (in_dim + embed_pad) * embed_pad * wb
                      + 2 * embed_pad * 4
                      + batch_pad * embed_pad * ob)
    cost = pl.CostEstimate(flops=flops,
                           transcendentals=batch_pad * embed_pad,
                           bytes_accessed=bytes_accessed)

    if use_resident:
        out_padded = pl.pallas_call(
            _cond_kernel_resident,
            out_shape=jax.ShapeDtypeStruct((batch_pad, embed_pad), out_dtype),
            grid=(batch_pad // tm,),
            in_specs=[
                pl.BlockSpec((tm, in_dim), lambda i: (i, 0)),             # x
                pl.BlockSpec((in_dim, embed_pad), lambda i: (0, 0)),      # w0
                pl.BlockSpec((1, embed_pad), lambda i: (0, 0)),           # b0
                pl.BlockSpec((embed_pad, embed_pad), lambda i: (0, 0)),   # w1
                pl.BlockSpec((1, embed_pad), lambda i: (0, 0)),           # b1
            ],
            out_specs=pl.BlockSpec((tm, embed_pad), lambda i: (i, 0)),
            compiler_params=pltpu.CompilerParams(
                dimension_semantics=("parallel",),
                vmem_limit_bytes=vmem_limit,
            ),
            cost_estimate=cost,
        )(xp, w0p, b0p, w1p, b1p)
    else:
        out_padded = pl.pallas_call(
            _cond_kernel_ntiled,
            out_shape=jax.ShapeDtypeStruct((batch_pad, embed_pad), out_dtype),
            grid=(batch_pad // tm, embed_pad // tn),
            in_specs=[
                pl.BlockSpec((tm, in_dim), lambda i, j: (i, 0)),          # x
                pl.BlockSpec((in_dim, embed_pad), lambda i, j: (0, 0)),   # w0
                pl.BlockSpec((1, embed_pad), lambda i, j: (0, 0)),        # b0
                pl.BlockSpec((embed_pad, tn), lambda i, j: (0, j)),       # w1 col blk
                pl.BlockSpec((1, tn), lambda i, j: (0, j)),               # b1
            ],
            out_specs=pl.BlockSpec((tm, tn), lambda i, j: (i, j)),
            scratch_shapes=[pltpu.VMEM((tm, embed_pad), w0p.dtype)],      # h cache
            compiler_params=pltpu.CompilerParams(
                # j must be "arbitrary": the h scratch written at j==0 is
                # reused by j>0 within the same batch tile on the same core.
                dimension_semantics=("parallel", "arbitrary"),
                vmem_limit_bytes=vmem_limit,
            ),
            cost_estimate=cost,
        )(xp, w0p, b0p, w1p, b1p)

    return out_padded[:batch, :embed_dim]


def default_init_uniform(key, shape, fan_in, fan_out, scale=1.0):
    """score-sde `default_init`: variance scaling, scale=1, fan_avg, uniform."""
    fan_avg = (fan_in + fan_out) / 2.0
    limit = jnp.sqrt(3.0 * scale / fan_avg)
    return jax.random.uniform(key, shape, jnp.float32, -limit, limit)


if __name__ == "__main__":
    key = jax.random.PRNGKey(0)

    def make_case(k, batch, in_dim, embed_dim):
        k_x, k_w0, k_w1, k_rm, k_rv = jax.random.split(k, 5)
        x = jax.random.normal(k_x, (batch, in_dim), jnp.float32)
        rm = 0.1 * jax.random.normal(k_rm, (in_dim,), jnp.float32)
        rv = 1.0 + 0.2 * jax.random.uniform(k_rv, (in_dim,), jnp.float32)
        w0 = default_init_uniform(k_w0, (in_dim, embed_dim), in_dim, embed_dim)
        b0 = jnp.zeros((embed_dim,), jnp.float32)
        w1 = default_init_uniform(k_w1, (embed_dim, embed_dim), embed_dim, embed_dim)
        b1 = jnp.zeros((embed_dim,), jnp.float32)
        return x, rm, rv, w0, b0, w1, b1

    def reference(x, rm, rv, w0, b0, w1, b1):
        xn = (x - rm[None, :]) / jnp.sqrt(rv[None, :] + BN_EPS)
        h = xn @ w0 + b0[None, :]
        h = h * jax.nn.sigmoid(h)
        return h @ w1 + b1[None, :]

    k1, k2 = jax.random.split(key)

    # Case 1: small shapes -> resident-weight path.
    x, rm, rv, w0, b0, w1, b1 = make_case(k1, batch=8, in_dim=16, embed_dim=32)
    params = prepare_conditioner_params(rm, rv, w0, b0, w1, b1)   # hoisted prep
    out = jax.block_until_ready(conditioner_apply(params, x))
    ref = reference(x, rm, rv, w0, b0, w1, b1)
    assert out.shape == (8, 32)
    assert jnp.allclose(out, ref, atol=3e-2, rtol=3e-2), \
        float(jnp.max(jnp.abs(out - ref)))

    # Case 2: exercise the N-tiled (bounded resident VMEM) path + batch tiling.
    x, rm, rv, w0, b0, w1, b1 = make_case(k2, batch=16, in_dim=16, embed_dim=256)
    params = prepare_conditioner_params(rm, rv, w0, b0, w1, b1)
    out = jax.block_until_ready(
        conditioner_apply(params, x, force_ntiled=True, tn=128))
    ref = reference(x, rm, rv, w0, b0, w1, b1)
    assert out.shape == (16, 256)
    assert jnp.allclose(out, ref, atol=3e-2, rtol=3e-2), \
        float(jnp.max(jnp.abs(out - ref)))

    print("KERNEL_OK")
</pallas_src>

<mosaic_0001>
module attributes {stable_mosaic.version = 11 : i64} {
  func.func @_cond_kernel_resident(%arg0: i32, %arg1: memref<8x16xbf16, #tpu.memory_space<vmem>>, %arg2: memref<16x128xbf16, #tpu.memory_space<vmem>>, %arg3: memref<1x128xf32, #tpu.memory_space<vmem>>, %arg4: memref<128x128xbf16, #tpu.memory_space<vmem>>, %arg5: memref<1x128xf32, #tpu.memory_space<vmem>>, %arg6: memref<8x128xf32, #tpu.memory_space<vmem>>) attributes {dimension_semantics = [#tpu.dimension_semantics<parallel>], iteration_bounds = array<i64: 1>, scalar_prefetch = 0 : i64, scratch_operands = 0 : i64, tpu.core_type = #tpu.core_type<tc>, window_params = [{transform_indices = @transform_0, window_bounds = array<i64: 8, 16>}, {pipeline_mode = #tpu.pipeline_mode<synchronous>, transform_indices = @transform_1, window_bounds = array<i64: 16, 128>}, {pipeline_mode = #tpu.pipeline_mode<synchronous>, transform_indices = @transform_2, window_bounds = array<i64: 1, 128>}, {pipeline_mode = #tpu.pipeline_mode<synchronous>, transform_indices = @transform_3, window_bounds = array<i64: 128, 128>}, {pipeline_mode = #tpu.pipeline_mode<synchronous>, transform_indices = @transform_4, window_bounds = array<i64: 1, 128>}, {transform_indices = @transform_5, window_bounds = array<i64: 8, 128>}]} {
    %c0 = arith.constant 0 : index
    %c0_0 = arith.constant 0 : index
    %0 = vector.load %arg1[%c0, %c0_0] : memref<8x16xbf16, #tpu.memory_space<vmem>>, vector<8x16xbf16>
    %c0_1 = arith.constant 0 : index
    %c0_2 = arith.constant 0 : index
    %1 = vector.load %arg2[%c0_1, %c0_2] : memref<16x128xbf16, #tpu.memory_space<vmem>>, vector<16x128xbf16>
    %cst = arith.constant dense<0.000000e+00> : vector<8x128xf32>
    %2 = tpu.matmul %0, %1, %cst {dimension_numbers = #tpu.dot_dimension_numbers<[1], [0], [0], [1], [0, 0, 1, 1], [], []>} : vector<8x16xbf16>, vector<16x128xbf16>, vector<8x128xf32> -> vector<8x128xf32>
    %c0_3 = arith.constant 0 : index
    %c0_4 = arith.constant 0 : index
    %3 = vector.load %arg3[%c0_3, %c0_4] : memref<1x128xf32, #tpu.memory_space<vmem>>, vector<1x128xf32>
    %4 = vector.broadcast %3 : vector<1x128xf32> to vector<8x128xf32>
    %5 = arith.addf %2, %4 : vector<8x128xf32>
    %6 = arith.negf %5 : vector<8x128xf32>
    %7 = math.exp %6 : vector<8x128xf32>
    %cst_5 = arith.constant 1.000000e+00 : f32
    %8 = vector.broadcast %cst_5 : f32 to vector<8x128xf32>
    %9 = arith.addf %8, %7 : vector<8x128xf32>
    %10 = arith.divf %8, %9 : vector<8x128xf32>
    %11 = arith.mulf %5, %10 : vector<8x128xf32>
    %12 = arith.truncf %11 : vector<8x128xf32> to vector<8x128xbf16>
    %c0_6 = arith.constant 0 : index
    %c0_7 = arith.constant 0 : index
    %13 = vector.load %arg4[%c0_6, %c0_7] : memref<128x128xbf16, #tpu.memory_space<vmem>>, vector<128x128xbf16>
    %cst_8 = arith.constant dense<0.000000e+00> : vector<8x128xf32>
    %14 = tpu.matmul %12, %13, %cst_8 {dimension_numbers = #tpu.dot_dimension_numbers<[1], [0], [0], [1], [0, 0, 1, 1], [], []>} : vector<8x128xbf16>, vector<128x128xbf16>, vector<8x128xf32> -> vector<8x128xf32>
    %c0_9 = arith.constant 0 : index
    %c0_10 = arith.constant 0 : index
    %15 = vector.load %arg5[%c0_9, %c0_10] : memref<1x128xf32, #tpu.memory_space<vmem>>, vector<1x128xf32>
    %16 = vector.broadcast %15 : vector<1x128xf32> to vector<8x128xf32>
    %17 = arith.addf %14, %16 : vector<8x128xf32>
    %c0_11 = arith.constant 0 : index
    %c0_12 = arith.constant 0 : index
    %18 = vector.load %arg6[%c0_11, %c0_12] : memref<8x128xf32, #tpu.memory_space<vmem>>, vector<8x128xf32>
    tpu.vector_store %arg6[%c0_11, %c0_12], %17 {strides = array<i32>} : memref<8x128xf32, #tpu.memory_space<vmem>>, vector<8x128xf32>,
    return
  }
  func.func @transform_0(%arg0: i32) -> (i32, i32) {
    %c0_i32 = arith.constant 0 : i32
    %c0_i32_0 = arith.constant 0 : i32
    return %arg0, %c0_i32 : i32, i32
  }
  func.func @transform_1(%arg0: i32) -> (i32, i32) {
    %c0_i32 = arith.constant 0 : i32
    %c0_i32_0 = arith.constant 0 : i32
    %c0_i32_1 = arith.constant 0 : i32
    return %c0_i32, %c0_i32_0 : i32, i32
  }
  func.func @transform_2(%arg0: i32) -> (i32, i32) {
    %c0_i32 = arith.constant 0 : i32
    %c0_i32_0 = arith.constant 0 : i32
    %c0_i32_1 = arith.constant 0 : i32
    return %c0_i32, %c0_i32_0 : i32, i32
  }
  func.func @transform_3(%arg0: i32) -> (i32, i32) {
    %c0_i32 = arith.constant 0 : i32
    %c0_i32_0 = arith.constant 0 : i32
    %c0_i32_1 = arith.constant 0 : i32
    return %c0_i32, %c0_i32_0 : i32, i32
  }
  func.func @transform_4(%arg0: i32) -> (i32, i32) {
    %c0_i32 = arith.constant 0 : i32
    %c0_i32_0 = arith.constant 0 : i32
    %c0_i32_1 = arith.constant 0 : i32
    return %c0_i32, %c0_i32_0 : i32, i32
  }
  func.func @transform_5(%arg0: i32) -> (i32, i32) {
    %c0_i32 = arith.constant 0 : i32
    %c0_i32_0 = arith.constant 0 : i32
    return %arg0, %c0_i32 : i32, i32
  }
}

</mosaic_0001>

<llo_original>
// kernel: tpu_custom_call.1
$region0: #{tpu_custom_call.1}
  #allocation0 [shape = 'u32[]', space=smem, size = 0x4, offset = 0x4, fixed_abs, tag = 'smem constant byte address 0x4 - core index']
  #allocation1 [shape = 'u32[72,128]{1,0:T(1,128)}', space=vmem, size = 0x9000, scoped, tag = 'internal scratch']
  %s0 = inlined_call_operand.hbm [shape: bf16[8,16], index: 0, kind: input, shape index: {}]
  %s1 = inlined_call_operand.hbm [shape: bf16[16,128], index: 1, kind: input, shape index: {}]
  %s2 = inlined_call_operand.vmem [shape: f32[1,128], index: 2, kind: input, shape index: {}]
  %s3 = inlined_call_operand.hbm [shape: bf16[128,128], index: 3, kind: input, shape index: {}]
  %s4 = inlined_call_operand.vmem [shape: f32[1,128], index: 4, kind: input, shape index: {}]
  %s5 = inlined_call_operand.hbm [shape: f32[8,128], index: 5, kind: output, shape index: {}]
  %s6 = sld [smem:[#allocation0]]
  $region42: #{tpu_custom_call.1} parent=0
    _
  %s8 = ssub.s32 1, %s6
  %s9 = scalar_select 0, %s8, %s6
  $region1: #{tpu_custom_call.1} parent=0
    #allocation2 [shape = 'u8[2048]{0}', space=vmem, size = 0x800, scoped, tag = 'input window, operand 0, single buffered']
    #allocation3 [shape = 's32[1]{0}', space=sflag, size = 0x4, scoped, tag = 'scoped memory for tpu_custom_call.1']
    #allocation4 [shape = 's32[1]{0}', space=sflag, size = 0x4, scoped, tag = 'scoped memory for tpu_custom_call.1']
    #allocation5 [shape = 'u8[4096]{0}', space=vmem, size = 0x1000, scoped, tag = 'input window, operand 1, single buffered']
    #allocation6 [shape = 's32[1]{0}', space=sflag, size = 0x4, scoped, tag = 'scoped memory for tpu_custom_call.1']
    #allocation7 [shape = 'u8[32768]{0}', space=vmem, size = 0x8000, scoped, tag = 'input window, operand 3, single buffered']
    #allocation8 [shape = 'u8[4096]{0}', space=vmem, size = 0x1000, scoped, tag = 'output window, operand 0, single buffered']
    %10 = vsyncpa [#allocation3], 0
    %11 = vsyncpa [#allocation6], 0
    %12 = vsyncpa [#allocation4], 0
    // Predicated region
    $region2: #{tpu_custom_call.1} parent=1 // pred_check
      _
    $region3: #{tpu_custom_call.1} parent=1 // pred_check_branch
      %14 = sbr.rel (0) target = $region5
    $region4: #{tpu_custom_call.1} parent=1 // pred_region
      %16 = vsyncadd [#allocation3], 0
      %s18 = sshll.u32 %s0, 4
      %s19 = int_to_ptr.hbm [resolvable:$true] %s18
      %s20 = sshll.u32 [#allocation2], 4
      %s21 = int_to_ptr.vmem [resolvable:$true] %s20
      %23 = dma.hbm_to_vmem [thread:$0]  %s19, 64, %s21, [#allocation3]
    $region5: #{tpu_custom_call.1} parent=1 // pred_fallthru
      _
    // Predicated region
    $region6: #{tpu_custom_call.1} parent=1 // pred_check
      _
    $region7: #{tpu_custom_call.1} parent=1 // pred_check_branch
      %25 = sbr.rel (0) target = $region9
    $region8: #{tpu_custom_call.1} parent=1 // pred_region
      %27 = vsyncadd [#allocation6], 0
      %s28 = sshll.u32 %s1, 4
      %s29 = int_to_ptr.hbm [resolvable:$true] %s28
      %s30 = sshll.u32 [#allocation5], 4
      %s31 = int_to_ptr.vmem [resolvable:$true] %s30
      %36 = dma.hbm_to_vmem [thread:$0]  %s29, 128, %s31, [#allocation6], 64, 64, 4
    $region9: #{tpu_custom_call.1} parent=1 // pred_fallthru
      _
    // Predicated region
    $region10: #{tpu_custom_call.1} parent=1 // pred_check
      _
    $region11: #{tpu_custom_call.1} parent=1 // pred_check_branch
      %38 = sbr.rel (0) target = $region13
    $region12: #{tpu_custom_call.1} parent=1 // pred_region
      _
    $region13: #{tpu_custom_call.1} parent=1 // pred_fallthru
      _
    // Predicated region
    $region14: #{tpu_custom_call.1} parent=1 // pred_check
      _
    $region15: #{tpu_custom_call.1} parent=1 // pred_check_branch
      %40 = sbr.rel (0) target = $region17
    $region16: #{tpu_custom_call.1} parent=1 // pred_region
      %42 = vsyncadd [#allocation6], 0
      %s43 = sshll.u32 %s3, 4
      %s44 = int_to_ptr.hbm [resolvable:$true] %s43
      %s45 = sshll.u32 [#allocation7], 4
      %s46 = int_to_ptr.vmem [resolvable:$true] %s45
      %51 = dma.hbm_to_vmem [thread:$0]  %s44, 1024, %s46, [#allocation6], 64, 64, 4
    $region17: #{tpu_custom_call.1} parent=1 // pred_fallthru
      _
    // Predicated region
    $region18: #{tpu_custom_call.1} parent=1 // pred_check
      _
    $region19: #{tpu_custom_call.1} parent=1 // pred_check_branch
      %53 = sbr.rel (0) target = $region21
    $region20: #{tpu_custom_call.1} parent=1 // pred_region
      _
    $region21: #{tpu_custom_call.1} parent=1 // pred_fallthru
      _
    // Predicated region
    $region22: #{tpu_custom_call.1} parent=1 // pred_check
      _
    $region23: #{tpu_custom_call.1} parent=1 // pred_check_branch
      %55 = sbr.rel (0) target = $region25
    $region24: #{tpu_custom_call.1} parent=1 // pred_region
      %57 = dma.done [#allocation3], 64
    $region25: #{tpu_custom_call.1} parent=1 // pred_fallthru
      _
    // Predicated region
    $region26: #{tpu_custom_call.1} parent=1 // pred_check
      _
    $region27: #{tpu_custom_call.1} parent=1 // pred_check_branch
      %59 = sbr.rel (0) target = $region29
    $region28: #{tpu_custom_call.1} parent=1 // pred_region
      %61 = dma.done [#allocation6], 128
    $region29: #{tpu_custom_call.1} parent=1 // pred_fallthru
      _
    // Predicated region
    $region30: #{tpu_custom_call.1} parent=1 // pred_check
      _
    $region31: #{tpu_custom_call.1} parent=1 // pred_check_branch
      %63 = sbr.rel (0) target = $region33
    $region32: #{tpu_custom_call.1} parent=1 // pred_region
      %65 = dma.done [#allocation6], 1024
    $region33: #{tpu_custom_call.1} parent=1 // pred_fallthru
      _
    %v67 = vld [vmem:[#allocation2] sm:$0xf]
    %v68 = vld [vmem:[#allocation5] sm:$0xf]
    %v69 = vld [vmem:[#allocation5 + $0x4] sm:$0xf]
    %v70 = vld [vmem:[%s2] sm:$0x1]
    %v72 = vperm.slane %v70, 0
    %v76 = vunpack.c.l.b16 %v68
    %v77 = vunpack.c.l.b16 %v69
    %v78 = vpack.c.b16 %v77, %v76
    %vm80 = vcmask 130048
    %v82 = vsel %vm80, %v67, 0
    %84 = vmatpush.bf16.msra.mxu0 0
    %85 = vmatpush.bf16.msra.mxu0 0
    %86 = vmatpush.bf16.msra.mxu0 0
    %87 = vmatpush.bf16.msra.mxu0 0
    %88 = vmatpush.bf16.msra.mxu0 0
    %89 = vmatpush.bf16.msra.mxu0 0
    %90 = vmatpush.bf16.msra.mxu0 0
    %91 = vmatpush.bf16.msra.mxu0 %v78
    %92 = vmatmul.bf16.gmra.mxu0 %v82
    %v93 = vpop.f32.mrf.mxu0
    %v94 = vadd.f32 %v72, %v93
    %v95 = vpop.f32.mrf.mxu0
    %96 = vdwg.mxu0
    %v97 = vxor.u32 %v94, 2147483648
    %v98 = vmul.f32 %v97, 1.442695
    %v99 = vpow.pop %v98
    %v100 = vadd.f32 %v99, 1.0
    %v101 = vrcp.pop %v100
    %v102 = vmul.f32 %v100, %v101
    %v103 = vsub.f32 1.0, %v102
    %v104 = vmul.f32 %v101, %v103
    %v105 = vadd.f32 %v101, %v104
    %vm106 = vweird.f32 %v100
    %vm107 = vweird.f32 %v101
    %vm108 = vmor %vm106, %vm107
    %v109 = vsel %vm108, %v101, %v105
    %v110 = vand.u32 2147483647, %v100
    %vm111 = vcmp.eq.f32.partialorder %v110, 8.507059e+37
    %v112 = vand.u32 %v100, 2147483648
    %v113 = vor.u32 1.1754944e-38, %v112
    %v114 = vsel %vm111, %v113, %v109
    %v115 = vmul.f32 1.0, %v114
    %v116 = vmul.f32 %v94, %v115
    %v117 = vpack.c.bf16 %v116, %v116
    %v118 = vld [vmem:[#allocation7] sm:$0xf]
    %v119 = vld [vmem:[#allocation7 + $0x4] sm:$0xf]
    %v120 = vld [vmem:[#allocation7 + $0x8] sm:$0xf]
    %v121 = vld [vmem:[#allocation7 + $0xc] sm:$0xf]
    %v122 = vld [vmem:[#allocation7 + $0x10] sm:$0xf]
    %v123 = vld [vmem:[#allocation7 + $0x14] sm:$0xf]
    %v124 = vld [vmem:[#allocation7 + $0x18] sm:$0xf]
    %v125 = vld [vmem:[#allocation7 + $0x1c] sm:$0xf]
    %v126 = vld [vmem:[#allocation7 + $0x20] sm:$0xf]
    %v127 = vld [vmem:[#allocation7 + $0x24] sm:$0xf]
    %v128 = vld [vmem:[#allocation7 + $0x28] sm:$0xf]
    %v129 = vld [vmem:[#allocation7 + $0x2c] sm:$0xf]
    %v130 = vld [vmem:[#allocation7 + $0x30] sm:$0xf]
    %v131 = vld [vmem:[#allocation7 + $0x34] sm:$0xf]
    %v132 = vld [vmem:[#allocation7 + $0x38] sm:$0xf]
    %v133 = vld [vmem:[#allocation7 + $0x3c] sm:$0xf]
    %v134 = vld [vmem:[%s4] sm:$0x1]
    %v136 = vperm.slane %v134, 0
    %v154 = vunpack.c.l.b16 %v118
    %v155 = vunpack.c.l.b16 %v119
    %v156 = vunpack.c.l.b16 %v120
    %v157 = vunpack.c.l.b16 %v121
    %v158 = vunpack.c.l.b16 %v122
    %v159 = vunpack.c.l.b16 %v123
    %v160 = vunpack.c.l.b16 %v124
    %v161 = vunpack.c.l.b16 %v125
    %v162 = vunpack.c.l.b16 %v126
    %v163 = vunpack.c.l.b16 %v127
    %v164 = vunpack.c.l.b16 %v128
    %v165 = vunpack.c.l.b16 %v129
    %v166 = vunpack.c.l.b16 %v130
    %v167 = vunpack.c.l.b16 %v131
    %v168 = vunpack.c.l.b16 %v132
    %v169 = vunpack.c.l.b16 %v133
    %v170 = vpack.c.b16 %v155, %v154
    %v171 = vpack.c.b16 %v157, %v156
    %v172 = vpack.c.b16 %v159, %v158
    %v173 = vpack.c.b16 %v161, %v160
    %v174 = vpack.c.b16 %v163, %v162
    %v175 = vpack.c.b16 %v165, %v164
    %v176 = vpack.c.b16 %v167, %v166
    %v177 = vpack.c.b16 %v169, %v168
    %186 = vmatpush.bf16.msra.mxu0 %v177
    %187 = vmatpush.bf16.msra.mxu0 %v176
    %188 = vmatpush.bf16.msra.mxu0 %v175
    %189 = vmatpush.bf16.msra.mxu0 %v174
    %190 = vmatpush.bf16.msra.mxu0 %v173
    %191 = vmatpush.bf16.msra.mxu0 %v172
    %192 = vmatpush.bf16.msra.mxu0 %v171
    %193 = vmatpush.bf16.msra.mxu0 %v170
    %194 = vmatmul.bf16.gmra.mxu0 %v117
    %v195 = vpop.f32.mrf.mxu0
    %v196 = vadd.f32 %v136, %v195
    %v197 = vpop.f32.mrf.mxu0
    %198 = vdwg.mxu0
    %199 = vst [vmem:[#allocation8] sm:$0xff] %v196
    // Predicated region
    $region34: #{tpu_custom_call.1} parent=1 // pred_check
      _
    $region35: #{tpu_custom_call.1} parent=1 // pred_check_branch
      %201 = sbr.rel (0) target = $region37
    $region36: #{tpu_custom_call.1} parent=1 // pred_region
      %203 = vsyncadd [#allocation4], 0
      %s205 = sshll.u32 [#allocation8], 4
      %s206 = int_to_ptr.vmem [resolvable:$true] %s205
      %s207 = sshll.u32 %s5, 4
      %s208 = int_to_ptr.hbm [resolvable:$true] %s207
      %210 = dma.vmem_to_hbm [thread:$0]  %s206, 128, %s208, [#allocation4]
    $region37: #{tpu_custom_call.1} parent=1 // pred_fallthru
      _
    // Predicated region
    $region38: #{tpu_custom_call.1} parent=1 // pred_check
      _
    $region39: #{tpu_custom_call.1} parent=1 // pred_check_branch
      %212 = sbr.rel (0) target = $region41
    $region40: #{tpu_custom_call.1} parent=1 // pred_region
      %214 = dma.done [#allocation4], 128
    $region41: #{tpu_custom_call.1} parent=1 // pred_fallthru
      _
    %215 = vsyncpa [#allocation3], 1
    %216 = vsyncpa [#allocation6], 1
    %217 = vsyncpa [#allocation4], 1

</llo_original>
